<compile_context>
chip_gen: v7x
topology: tpu7x:2x2x1
jax: 0.10.0
libtpu: 0.0.40
codegen_flags: <defaults>
</compile_context>

<pallas_src>
import functools
import math

import jax
import jax.numpy as jnp
from jax.experimental import pallas as pl
from jax.experimental.pallas import tpu as pltpu

_DEG2RAD = math.pi / 180.0


def _geo_embeddings_kernel(deg_ref, w_ref, b_ref, out_ref, *, channels, rows_per_lane):
    """One batch tile.

    deg_ref: (tp, 2R)  f32   lane 2r = lon of packed row r, lane 2r+1 = lat
    w_ref:   (3, R*C)  f32   W.T tiled R times along lanes
    b_ref:   (1, R*C)  f32   bias tiled R times along lanes
    out_ref: (tp, R*C)       packed output: lane group r holds batch row p*R + r
    """
    C = channels
    R = rows_per_lane
    tp = deg_ref.shape[0]

    rad = deg_ref[...] * _DEG2RAD          # (tp, 2R)
    cos = jnp.cos(rad)                     # EUP; 2R live lanes per vreg
    sin = jnp.sin(rad)

    def expand(cols):
        # cols: R columns of shape (tp, 1) -> (tp, R*C); column r is repeated over
        # its C-lane group.  Only lane-broadcasts + one static lane-concat; no
        # masked stores downstream when R*C is a multiple of 128.
        parts = [jnp.broadcast_to(col, (tp, C)) for col in cols]
        return parts[0] if R == 1 else jnp.concatenate(parts, axis=-1)

    cart_x = expand([cos[:, 2 * r + 1:2 * r + 2] * cos[:, 2 * r:2 * r + 1] for r in range(R)])
    cart_y = expand([cos[:, 2 * r + 1:2 * r + 2] * sin[:, 2 * r:2 * r + 1] for r in range(R)])
    cart_z = expand([sin[:, 2 * r + 1:2 * r + 2] for r in range(R)])

    # Linear(3, C) expanded over K=3 as pure VPU FMAs on lane-dense vregs.
    out = (cart_x * w_ref[0:1, :]
           + cart_y * w_ref[1:2, :]
           + cart_z * w_ref[2:3, :]
           + b_ref[...])
    out_ref[...] = out.astype(out_ref.dtype)


def geo_embeddings(degrees: jax.Array, weight: jax.Array, bias: jax.Array,
                   out_dtype=jnp.float32) -> jax.Array:
    """degrees: (B, 2) decimal degrees; weight: (C, 3); bias: (C,) -> (B, C)."""
    B = int(degrees.shape[0])
    C = int(weight.shape[0])

    degrees = degrees.astype(jnp.float32)
    weight_t = jnp.transpose(weight).astype(jnp.float32)        # (3, C)
    bias = bias.astype(jnp.float32)

    # Lane-packing factor: R consecutive batch rows share one output row of R*C
    # lanes.  R = 128 // gcd(C, 128) makes R*C a multiple of 128 (unmasked vst);
    # capped at 16 to bound in-kernel unrolled code for tiny channel counts.
    R = min(128 // math.gcd(C, 128), 16)

    # Batch tile (in rows): multiple of 8*R so the packed block keeps sublane
    # alignment; sized so the output block stays <= ~2 MiB (x2 double-buffered),
    # safe inside every generation's scoped-VMEM default.
    step = 8 * R
    rows = min(4096, (2 * 1024 * 1024) // (C * 4))
    rows = max(step, (rows // step) * step)
    b_rounded = pl.cdiv(B, step) * step
    tile_rows = min(rows, b_rounded)

    b_pad = pl.cdiv(B, tile_rows) * tile_rows
    num_tiles = b_pad // tile_rows
    tp = tile_rows // R                                          # packed rows per tile

    # Padded rows (lon=lat=0) produce finite values and are sliced off at the end.
    deg_pad = jnp.pad(degrees, ((0, b_pad - B), (0, 0)))
    deg_packed = deg_pad.reshape(b_pad // R, 2 * R)              # free contiguous view
    w_tiled = jnp.tile(weight_t, (1, R))                         # (3, R*C)
    b_tiled = jnp.tile(bias.reshape(1, C), (1, R))               # (1, R*C)

    kernel = functools.partial(_geo_embeddings_kernel, channels=C, rows_per_lane=R)

    out_packed = pl.pallas_call(
        kernel,
        out_shape=jax.ShapeDtypeStruct((b_pad // R, R * C), out_dtype),
        grid=(num_tiles,),
        in_specs=[
            pl.BlockSpec((tp, 2 * R), lambda i: (i, 0)),         # degrees: moves with tile
            pl.BlockSpec((3, R * C), lambda i: (0, 0)),          # weight:  resident
            pl.BlockSpec((1, R * C), lambda i: (0, 0)),          # bias:    resident
        ],
        out_specs=pl.BlockSpec((tp, R * C), lambda i: (i, 0)),
        compiler_params=pltpu.CompilerParams(
            dimension_semantics=("parallel",),                   # megacore on v7x
        ),
    )(deg_packed, w_tiled, b_tiled)

    # (b_pad//R, R*C) row-major is byte-identical to (b_pad, C) row-major.
    return out_packed.reshape(b_pad, C)[:B]


def geo_embeddings_ref(degrees, weight, bias):
    rad = jnp.deg2rad(degrees.astype(jnp.float32))
    c = jnp.cos(rad)
    s = jnp.sin(rad)
    cart = jnp.stack([c[:, 1] * c[:, 0], c[:, 1] * s[:, 0], s[:, 1]], axis=-1)
    return cart @ weight.T.astype(jnp.float32) + bias.astype(jnp.float32)[None, :]


if __name__ == "__main__":
    key = jax.random.PRNGKey(0)

    def make_inputs(k, batch, channels):
        k_lon, k_lat, k_w, k_b = jax.random.split(k, 4)
        lon = jax.random.uniform(k_lon, (batch, 1), jnp.float32, minval=-180.0, maxval=180.0)
        lat = jax.random.uniform(k_lat, (batch, 1), jnp.float32, minval=-90.0, maxval=90.0)
        degrees = jnp.concatenate([lon, lat], axis=-1)           # (batch, 2)
        bound = 1.0 / math.sqrt(3.0)                             # PyTorch Linear default init
        weight = jax.random.uniform(k_w, (channels, 3), jnp.float32, minval=-bound, maxval=bound)
        b = jax.random.uniform(k_b, (channels,), jnp.float32, minval=-bound, maxval=bound)
        return degrees, weight, b

    # Case 1: C=32 -> R=4, 128-lane packed output (unmasked stores).
    degrees, weight, bias = make_inputs(key, 8, 32)
    out = jax.block_until_ready(geo_embeddings(degrees, weight, bias))
    ref = geo_embeddings_ref(degrees, weight, bias)
    assert out.shape == (8, 32)
    assert jnp.allclose(out, ref, atol=1e-5, rtol=1e-5), "C=32 packed path mismatch"

    # Case 2: ragged batch, C=48 -> R=8, 384-lane packed output.
    degrees2, weight2, bias2 = make_inputs(jax.random.fold_in(key, 1), 37, 48)
    out2 = jax.block_until_ready(geo_embeddings(degrees2, weight2, bias2))
    ref2 = geo_embeddings_ref(degrees2, weight2, bias2)
    assert out2.shape == (37, 48)
    assert jnp.allclose(out2, ref2, atol=1e-5, rtol=1e-5), "C=48 packed path mismatch"

    # Case 3: C=128 -> R=1 (already lane-dense, no packing).
    degrees3, weight3, bias3 = make_inputs(jax.random.fold_in(key, 2), 5, 128)
    out3 = jax.block_until_ready(geo_embeddings(degrees3, weight3, bias3))
    ref3 = geo_embeddings_ref(degrees3, weight3, bias3)
    assert out3.shape == (5, 128)
    assert jnp.allclose(out3, ref3, atol=1e-5, rtol=1e-5), "C=128 unpacked path mismatch"

    print("KERNEL_OK")
</pallas_src>

<mosaic_0001>
module attributes {stable_mosaic.version = 11 : i64} {
  func.func @_geo_embeddings_kernel(%arg0: i32, %arg1: memref<8x8xf32, #tpu.memory_space<vmem>>, %arg2: memref<3x128xf32, #tpu.memory_space<vmem>>, %arg3: memref<1x128xf32, #tpu.memory_space<vmem>>, %arg4: memref<8x128xf32, #tpu.memory_space<vmem>>) attributes {dimension_semantics = [#tpu.dimension_semantics<parallel>], iteration_bounds = array<i64: 1>, scalar_prefetch = 0 : i64, scratch_operands = 0 : i64, tpu.core_type = #tpu.core_type<tc>, window_params = [{transform_indices = @transform_0, window_bounds = array<i64: 8, 8>}, {pipeline_mode = #tpu.pipeline_mode<synchronous>, transform_indices = @transform_1, window_bounds = array<i64: 3, 128>}, {pipeline_mode = #tpu.pipeline_mode<synchronous>, transform_indices = @transform_2, window_bounds = array<i64: 1, 128>}, {transform_indices = @transform_3, window_bounds = array<i64: 8, 128>}]} {
    %c0 = arith.constant 0 : index
    %c0_0 = arith.constant 0 : index
    %0 = vector.load %arg1[%c0, %c0_0] : memref<8x8xf32, #tpu.memory_space<vmem>>, vector<8x8xf32>
    %cst = arith.constant 0.0174532924 : f32
    %1 = vector.broadcast %cst : f32 to vector<8x8xf32>
    %2 = arith.mulf %0, %1 : vector<8x8xf32>
    %3 = math.cos %2 : vector<8x8xf32>
    %4 = math.sin %2 : vector<8x8xf32>
    %5 = vector.extract_strided_slice %3 {offsets = [0, 1], sizes = [8, 1], strides = [1, 1]} : vector<8x8xf32> to vector<8x1xf32>
    %6 = vector.extract_strided_slice %3 {offsets = [0, 0], sizes = [8, 1], strides = [1, 1]} : vector<8x8xf32> to vector<8x1xf32>
    %7 = arith.mulf %5, %6 : vector<8x1xf32>
    %8 = vector.extract_strided_slice %3 {offsets = [0, 3], sizes = [8, 1], strides = [1, 1]} : vector<8x8xf32> to vector<8x1xf32>
    %9 = vector.extract_strided_slice %3 {offsets = [0, 2], sizes = [8, 1], strides = [1, 1]} : vector<8x8xf32> to vector<8x1xf32>
    %10 = arith.mulf %8, %9 : vector<8x1xf32>
    %11 = vector.extract_strided_slice %3 {offsets = [0, 5], sizes = [8, 1], strides = [1, 1]} : vector<8x8xf32> to vector<8x1xf32>
    %12 = vector.extract_strided_slice %3 {offsets = [0, 4], sizes = [8, 1], strides = [1, 1]} : vector<8x8xf32> to vector<8x1xf32>
    %13 = arith.mulf %11, %12 : vector<8x1xf32>
    %14 = vector.extract_strided_slice %3 {offsets = [0, 7], sizes = [8, 1], strides = [1, 1]} : vector<8x8xf32> to vector<8x1xf32>
    %15 = vector.extract_strided_slice %3 {offsets = [0, 6], sizes = [8, 1], strides = [1, 1]} : vector<8x8xf32> to vector<8x1xf32>
    %16 = arith.mulf %14, %15 : vector<8x1xf32>
    %17 = vector.shape_cast %7 : vector<8x1xf32> to vector<8x1xf32>
    %18 = vector.broadcast %17 : vector<8x1xf32> to vector<8x32xf32>
    %19 = vector.shape_cast %10 : vector<8x1xf32> to vector<8x1xf32>
    %20 = vector.broadcast %19 : vector<8x1xf32> to vector<8x32xf32>
    %21 = vector.shape_cast %13 : vector<8x1xf32> to vector<8x1xf32>
    %22 = vector.broadcast %21 : vector<8x1xf32> to vector<8x32xf32>
    %23 = vector.shape_cast %16 : vector<8x1xf32> to vector<8x1xf32>
    %24 = vector.broadcast %23 : vector<8x1xf32> to vector<8x32xf32>
    %25 = tpu.concatenate %18, %20, %22, %24 in 1 : vector<8x32xf32>, vector<8x32xf32>, vector<8x32xf32>, vector<8x32xf32> -> vector<8x128xf32>
    %26 = vector.extract_strided_slice %3 {offsets = [0, 1], sizes = [8, 1], strides = [1, 1]} : vector<8x8xf32> to vector<8x1xf32>
    %27 = vector.extract_strided_slice %4 {offsets = [0, 0], sizes = [8, 1], strides = [1, 1]} : vector<8x8xf32> to vector<8x1xf32>
    %28 = arith.mulf %26, %27 : vector<8x1xf32>
    %29 = vector.extract_strided_slice %3 {offsets = [0, 3], sizes = [8, 1], strides = [1, 1]} : vector<8x8xf32> to vector<8x1xf32>
    %30 = vector.extract_strided_slice %4 {offsets = [0, 2], sizes = [8, 1], strides = [1, 1]} : vector<8x8xf32> to vector<8x1xf32>
    %31 = arith.mulf %29, %30 : vector<8x1xf32>
    %32 = vector.extract_strided_slice %3 {offsets = [0, 5], sizes = [8, 1], strides = [1, 1]} : vector<8x8xf32> to vector<8x1xf32>
    %33 = vector.extract_strided_slice %4 {offsets = [0, 4], sizes = [8, 1], strides = [1, 1]} : vector<8x8xf32> to vector<8x1xf32>
    %34 = arith.mulf %32, %33 : vector<8x1xf32>
    %35 = vector.extract_strided_slice %3 {offsets = [0, 7], sizes = [8, 1], strides = [1, 1]} : vector<8x8xf32> to vector<8x1xf32>
    %36 = vector.extract_strided_slice %4 {offsets = [0, 6], sizes = [8, 1], strides = [1, 1]} : vector<8x8xf32> to vector<8x1xf32>
    %37 = arith.mulf %35, %36 : vector<8x1xf32>
    %38 = vector.shape_cast %28 : vector<8x1xf32> to vector<8x1xf32>
    %39 = vector.broadcast %38 : vector<8x1xf32> to vector<8x32xf32>
    %40 = vector.shape_cast %31 : vector<8x1xf32> to vector<8x1xf32>
    %41 = vector.broadcast %40 : vector<8x1xf32> to vector<8x32xf32>
    %42 = vector.shape_cast %34 : vector<8x1xf32> to vector<8x1xf32>
    %43 = vector.broadcast %42 : vector<8x1xf32> to vector<8x32xf32>
    %44 = vector.shape_cast %37 : vector<8x1xf32> to vector<8x1xf32>
    %45 = vector.broadcast %44 : vector<8x1xf32> to vector<8x32xf32>
    %46 = tpu.concatenate %39, %41, %43, %45 in 1 : vector<8x32xf32>, vector<8x32xf32>, vector<8x32xf32>, vector<8x32xf32> -> vector<8x128xf32>
    %47 = vector.extract_strided_slice %4 {offsets = [0, 1], sizes = [8, 1], strides = [1, 1]} : vector<8x8xf32> to vector<8x1xf32>
    %48 = vector.extract_strided_slice %4 {offsets = [0, 3], sizes = [8, 1], strides = [1, 1]} : vector<8x8xf32> to vector<8x1xf32>
    %49 = vector.extract_strided_slice %4 {offsets = [0, 5], sizes = [8, 1], strides = [1, 1]} : vector<8x8xf32> to vector<8x1xf32>
    %50 = vector.extract_strided_slice %4 {offsets = [0, 7], sizes = [8, 1], strides = [1, 1]} : vector<8x8xf32> to vector<8x1xf32>
    %51 = vector.shape_cast %47 : vector<8x1xf32> to vector<8x1xf32>
    %52 = vector.broadcast %51 : vector<8x1xf32> to vector<8x32xf32>
    %53 = vector.shape_cast %48 : vector<8x1xf32> to vector<8x1xf32>
    %54 = vector.broadcast %53 : vector<8x1xf32> to vector<8x32xf32>
    %55 = vector.shape_cast %49 : vector<8x1xf32> to vector<8x1xf32>
    %56 = vector.broadcast %55 : vector<8x1xf32> to vector<8x32xf32>
    %57 = vector.shape_cast %50 : vector<8x1xf32> to vector<8x1xf32>
    %58 = vector.broadcast %57 : vector<8x1xf32> to vector<8x32xf32>
    %59 = tpu.concatenate %52, %54, %56, %58 in 1 : vector<8x32xf32>, vector<8x32xf32>, vector<8x32xf32>, vector<8x32xf32> -> vector<8x128xf32>
    %c0_1 = arith.constant 0 : index
    %c0_2 = arith.constant 0 : index
    %60 = vector.load %arg2[%c0_1, %c0_2] : memref<3x128xf32, #tpu.memory_space<vmem>>, vector<1x128xf32>
    %61 = vector.broadcast %60 : vector<1x128xf32> to vector<8x128xf32>
    %62 = arith.mulf %25, %61 : vector<8x128xf32>
    %c1 = arith.constant 1 : index
    %c0_3 = arith.constant 0 : index
    %63 = vector.load %arg2[%c1, %c0_3] : memref<3x128xf32, #tpu.memory_space<vmem>>, vector<1x128xf32>
    %64 = vector.broadcast %63 : vector<1x128xf32> to vector<8x128xf32>
    %65 = arith.mulf %46, %64 : vector<8x128xf32>
    %66 = arith.addf %62, %65 : vector<8x128xf32>
    %c2 = arith.constant 2 : index
    %c0_4 = arith.constant 0 : index
    %67 = vector.load %arg2[%c2, %c0_4] : memref<3x128xf32, #tpu.memory_space<vmem>>, vector<1x128xf32>
    %68 = vector.broadcast %67 : vector<1x128xf32> to vector<8x128xf32>
    %69 = arith.mulf %59, %68 : vector<8x128xf32>
    %70 = arith.addf %66, %69 : vector<8x128xf32>
    %c0_5 = arith.constant 0 : index
    %c0_6 = arith.constant 0 : index
    %71 = vector.load %arg3[%c0_5, %c0_6] : memref<1x128xf32, #tpu.memory_space<vmem>>, vector<1x128xf32>
    %72 = vector.broadcast %71 : vector<1x128xf32> to vector<8x128xf32>
    %73 = arith.addf %70, %72 : vector<8x128xf32>
    %c0_7 = arith.constant 0 : index
    %c0_8 = arith.constant 0 : index
    %74 = vector.load %arg4[%c0_7, %c0_8] : memref<8x128xf32, #tpu.memory_space<vmem>>, vector<8x128xf32>
    tpu.vector_store %arg4[%c0_7, %c0_8], %73 {strides = array<i32>} : memref<8x128xf32, #tpu.memory_space<vmem>>, vector<8x128xf32>,
    return
  }
  func.func @transform_0(%arg0: i32) -> (i32, i32) {
    %c0_i32 = arith.constant 0 : i32
    %c0_i32_0 = arith.constant 0 : i32
    return %arg0, %c0_i32 : i32, i32
  }
  func.func @transform_1(%arg0: i32) -> (i32, i32) {
    %c0_i32 = arith.constant 0 : i32
    %c0_i32_0 = arith.constant 0 : i32
    %c0_i32_1 = arith.constant 0 : i32
    return %c0_i32, %c0_i32_0 : i32, i32
  }
  func.func @transform_2(%arg0: i32) -> (i32, i32) {
    %c0_i32 = arith.constant 0 : i32
    %c0_i32_0 = arith.constant 0 : i32
    %c0_i32_1 = arith.constant 0 : i32
    return %c0_i32, %c0_i32_0 : i32, i32
  }
  func.func @transform_3(%arg0: i32) -> (i32, i32) {
    %c0_i32 = arith.constant 0 : i32
    %c0_i32_0 = arith.constant 0 : i32
    return %arg0, %c0_i32 : i32, i32
  }
}

</mosaic_0001>

<llo_original>
// kernel: tpu_custom_call.1
$region0: #{tpu_custom_call.1}
  #allocation0 [shape = 'u32[]', space=smem, size = 0x4, offset = 0x4, fixed_abs, tag = 'smem constant byte address 0x4 - core index']
  #allocation1 [shape = 'u32[144,128]{1,0:T(1,128)}', space=vmem, size = 0x12000, scoped, tag = 'internal scratch']
  %s0 = inlined_call_operand.hbm [shape: f32[8,8], index: 0, kind: input, shape index: {}]
  %s1 = inlined_call_operand.hbm [shape: f32[3,128], index: 1, kind: input, shape index: {}]
  %s2 = inlined_call_operand.vmem [shape: f32[1,128], index: 2, kind: input, shape index: {}]
  %s3 = inlined_call_operand.hbm [shape: f32[8,128], index: 3, kind: output, shape index: {}]
  %s4 = sld [smem:[#allocation0]]
  $region30: #{tpu_custom_call.1} parent=0
    _
  %s6 = ssub.s32 1, %s4
  %s7 = scalar_select 0, %s6, %s4
  $region1: #{tpu_custom_call.1} parent=0
    #allocation2 [shape = 'u8[4096]{0}', space=vmem, size = 0x1000, scoped, tag = 'input window, operand 0, single buffered']
    #allocation3 [shape = 's32[1]{0}', space=sflag, size = 0x4, scoped, tag = 'scoped memory for tpu_custom_call.1']
    #allocation4 [shape = 's32[1]{0}', space=sflag, size = 0x4, scoped, tag = 'scoped memory for tpu_custom_call.1']
    #allocation5 [shape = 'u8[2048]{0}', space=vmem, size = 0x800, scoped, tag = 'input window, operand 1, single buffered']
    #allocation6 [shape = 's32[1]{0}', space=sflag, size = 0x4, scoped, tag = 'scoped memory for tpu_custom_call.1']
    #allocation7 [shape = 'u8[4096]{0}', space=vmem, size = 0x1000, scoped, tag = 'output window, operand 0, single buffered']
    %8 = vsyncpa [#allocation3], 0
    %9 = vsyncpa [#allocation6], 0
    %10 = vsyncpa [#allocation4], 0
    // Predicated region
    $region2: #{tpu_custom_call.1} parent=1 // pred_check
      _
    $region3: #{tpu_custom_call.1} parent=1 // pred_check_branch
      %12 = sbr.rel (0) target = $region5
    $region4: #{tpu_custom_call.1} parent=1 // pred_region
      %s14 = ssub.s32 128, 128
      %15 = vsyncadd [#allocation3], %s14
      %s17 = sshll.u32 [#allocation2], 4
      %s18 = int_to_ptr.vmem [resolvable:$true] %s17
      %20 = dma.hbm_to_vmem [thread:$0]  %s0, 128, %s18, [#allocation3]
    $region5: #{tpu_custom_call.1} parent=1 // pred_fallthru
      _
    // Predicated region
    $region6: #{tpu_custom_call.1} parent=1 // pred_check
      _
    $region7: #{tpu_custom_call.1} parent=1 // pred_check_branch
      %22 = sbr.rel (0) target = $region9
    $region8: #{tpu_custom_call.1} parent=1 // pred_region
      %s24 = ssub.s32 64, 64
      %25 = vsyncadd [#allocation6], %s24
      %s27 = sshll.u32 [#allocation5], 4
      %s28 = int_to_ptr.vmem [resolvable:$true] %s27
      %30 = dma.hbm_to_vmem [thread:$0]  %s1, 64, %s28, [#allocation6]
    $region9: #{tpu_custom_call.1} parent=1 // pred_fallthru
      _
    // Predicated region
    $region10: #{tpu_custom_call.1} parent=1 // pred_check
      _
    $region11: #{tpu_custom_call.1} parent=1 // pred_check_branch
      %32 = sbr.rel (0) target = $region13
    $region12: #{tpu_custom_call.1} parent=1 // pred_region
      _
    $region13: #{tpu_custom_call.1} parent=1 // pred_fallthru
      _
    // Predicated region
    $region14: #{tpu_custom_call.1} parent=1 // pred_check
      _
    $region15: #{tpu_custom_call.1} parent=1 // pred_check_branch
      %34 = sbr.rel (0) target = $region17
    $region16: #{tpu_custom_call.1} parent=1 // pred_region
      %35 = dma.done [#allocation3], 128
    $region17: #{tpu_custom_call.1} parent=1 // pred_fallthru
      _
    // Predicated region
    $region18: #{tpu_custom_call.1} parent=1 // pred_check
      _
    $region19: #{tpu_custom_call.1} parent=1 // pred_check_branch
      %37 = sbr.rel (0) target = $region21
    $region20: #{tpu_custom_call.1} parent=1 // pred_region
      %38 = dma.done [#allocation6], 64
    $region21: #{tpu_custom_call.1} parent=1 // pred_fallthru
      _
    %v39 = vld [vmem:[#allocation2] sm:$0xff]
    %v40 = vmul.f32 %v39, 0.017453292
    %v41 = vand.u32 2147483647, %v40
    %vm42 = vcmp.le.f32.partialorder %v41, 0.7853982
    %vm43 = vcmp.lt.s32.totalorder %v40, 0
    %v44 = vand.u32 %v40, 2139095040
    %v45 = vshrl.u32 %v44, 23
    %v46 = vsub.s32 %v45, 127
    %v47 = vand.u32 2147483647, %v40
    %v48 = vand.u32 %v47, 8388607
    %v49 = vor.u32 %v48, 8388608
    %v50 = vsub.s32 0, %v49
    %v51 = vadd.s32 %v46, 1
    %vm52 = vcmp.gt.s32.totalorder %v51, 0
    %v53 = vsel %vm52, %v51, 0
    %v54 = vshrl.u32 %v53, 5
    %v55 = vand.u32 %v53, 31
    %v56 = vsub.s32 32, %v55
    %v57 = vshrl.u32 683565275, %v56
    %v58 = vshll.u32 683565275, %v55
    %v59 = vshrl.u32 2475754826, %v56
    %v60 = vor.u32 %v58, %v59
    %v61 = vshll.u32 2475754826, %v55
    %v62 = vshrl.u32 2131351028, %v56
    %v63 = vor.u32 %v61, %v62
    %v64 = vshll.u32 2131351028, %v55
    %v65 = vshrl.u32 2102212464, %v56
    %v66 = vor.u32 %v64, %v65
    %v67 = vshll.u32 2102212464, %v55
    %v68 = vshrl.u32 920167782, %v56
    %v69 = vor.u32 %v67, %v68
    %v70 = vshll.u32 920167782, %v55
    %v71 = vshrl.u32 1326507024, %v56
    %v72 = vor.u32 %v70, %v71
    %vm73 = vcmp.lt.s32.totalorder %v54, 1
    %vm74 = vcmp.lt.s32.totalorder %v54, 2
    %vm75 = vcmp.lt.s32.totalorder %v54, 3
    %vm76 = vcmp.lt.s32.totalorder %v54, 4
    %v77 = vsel %vm73, %v57, %v60
    %v78 = vsel %vm76, %v66, 2102212464
    %v79 = vsel %vm75, %v63, %v78
    %v80 = vsel %vm74, %v77, %v79
    %v81 = vsel %vm73, %v60, %v63
    %v82 = vsel %vm76, %v69, 920167782
    %v83 = vsel %vm75, %v66, %v82
    %v84 = vsel %vm74, %v81, %v83
    %v85 = vsel %vm73, %v63, %v66
    %v86 = vsel %vm76, %v72, 1326507024
    %v87 = vsel %vm75, %v69, %v86
    %v88 = vsel %vm74, %v85, %v87
    %v89 = vshll.u32 %v49, 8
    %v90 = vmul.u32.u64.compose %v89, %v88
    %v91 = vextract.low.u32 %v90
    %v92 = vextract.high.u32 %v90
    %v93 = vmul.u32.u64.compose %v89, %v84
    %v94 = vextract.low.u32 %v93
    %v95 = vextract.high.u32 %v93
    %v96 = vmul.u32 %v89, %v80
    %v97 = vadd.s32 %v92, %v94
    %vm98 = vc.u32 %v92, %v94
    %v99 = vadd.s32 %v95, 1
    %v100 = vsel %vm98, %v99, %v95
    %v101 = vadd.s32 %v96, %v100
    %v102 = vadd.s32 %v101, 536870912
    %v103 = vshrl.u32 %v102, 30
    %v104 = vshll.u32 %v103, 30
    %v105 = vsub.s32 %v101, %v104
    %vm106 = vcmp.lt.s32.totalorder %v105, 0
    %v107 = vsub.s32 0, %v105
    %v108 = vsel %vm106, %v107, %v105
    %v109 = vclz %v108
    %v110 = vsub.s32 %v109, 2
    %vm111 = vcmp.gt.s32.totalorder 0, %v110
    %v112 = vsel %vm111, 0, %v110
    %v113 = vsub.s32 32, %v112
    %v114 = vshll.u32 %v105, %v112
    %v115 = vshrl.u32 %v97, %v113
    %v116 = vor.u32 %v114, %v115
    %v117 = vsub.s32 4294967266, %v112
    %v118 = vadd.s32 %v117, 127
    %v119 = vshll.u32 %v118, 23
    %v120 = vor.u32 4788187, %v119
    %v121 = vand.u32 2147483647, %v120
    %v123 = vcvt.s32.f32 %v116
    %v124 = vmul.f32 %v123, %v121
    %v125 = vxor.u32 %v124, 2147483648
    %v126 = vsel %vm43, %v125, %v124
    %v127 = vsub.s32 4, %v103
    %v128 = vsel %vm43, %v127, %v103
    %v129 = vsel %vm42, %v40, %v126
    %v130 = vsel %vm42, 0, %v128
    %v131 = vcosq.f32.pop %v129
    %v132 = vsinq.f32.pop %v129
    %vm133 = vweird.f32 %v40
    %v134 = vand.u32 %v130, 3
    %vm135 = vcmp.lt.s32.totalorder %v134, 2
    %vm136 = vcmp.eq.s32.totalorder %v134, 0
    %v137 = vxor.u32 %v132, 2147483648
    %v138 = vsel %vm136, %v131, %v137
    %vm139 = vcmp.eq.s32.totalorder %v134, 2
    %v140 = vxor.u32 %v131, 2147483648
    %v141 = vsel %vm139, %v140, %v132
    %v142 = vsel %vm135, %v138, %v141
    %v143 = vsel %vm133, nan, %v142
    %v144 = vand.u32 2147483647, %v40
    %vm145 = vcmp.le.f32.partialorder %v144, 0.7853982
    %vm146 = vcmp.lt.s32.totalorder %v40, 0
    %v147 = vand.u32 %v40, 2139095040
    %v148 = vshrl.u32 %v147, 23
    %v149 = vsub.s32 %v148, 127
    %v150 = vand.u32 2147483647, %v40
    %v151 = vand.u32 %v150, 8388607
    %v152 = vor.u32 %v151, 8388608
    %v153 = vsub.s32 0, %v152
    %v154 = vadd.s32 %v149, 1
    %vm155 = vcmp.gt.s32.totalorder %v154, 0
    %v156 = vsel %vm155, %v154, 0
    %v157 = vshrl.u32 %v156, 5
    %v158 = vand.u32 %v156, 31
    %v159 = vsub.s32 32, %v158
    %v160 = vshrl.u32 683565275, %v159
    %v161 = vshll.u32 683565275, %v158
    %v162 = vshrl.u32 2475754826, %v159
    %v163 = vor.u32 %v161, %v162
    %v164 = vshll.u32 2475754826, %v158
    %v165 = vshrl.u32 2131351028, %v159
    %v166 = vor.u32 %v164, %v165
    %v167 = vshll.u32 2131351028, %v158
    %v168 = vshrl.u32 2102212464, %v159
    %v169 = vor.u32 %v167, %v168
    %v170 = vshll.u32 2102212464, %v158
    %v171 = vshrl.u32 920167782, %v159
    %v172 = vor.u32 %v170, %v171
    %v173 = vshll.u32 920167782, %v158
    %v174 = vshrl.u32 1326507024, %v159
    %v175 = vor.u32 %v173, %v174
    %vm176 = vcmp.lt.s32.totalorder %v157, 1
    %vm177 = vcmp.lt.s32.totalorder %v157, 2
    %vm178 = vcmp.lt.s32.totalorder %v157, 3
    %vm179 = vcmp.lt.s32.totalorder %v157, 4
    %v180 = vsel %vm176, %v160, %v163
    %v181 = vsel %vm179, %v169, 2102212464
    %v182 = vsel %vm178, %v166, %v181
    %v183 = vsel %vm177, %v180, %v182
    %v184 = vsel %vm176, %v163, %v166
    %v185 = vsel %vm179, %v172, 920167782
    %v186 = vsel %vm178, %v169, %v185
    %v187 = vsel %vm177, %v184, %v186
    %v188 = vsel %vm176, %v166, %v169
    %v189 = vsel %vm179, %v175, 1326507024
    %v190 = vsel %vm178, %v172, %v189
    %v191 = vsel %vm177, %v188, %v190
    %v192 = vshll.u32 %v152, 8
    %v193 = vmul.u32.u64.compose %v192, %v191
    %v194 = vextract.low.u32 %v193
    %v195 = vextract.high.u32 %v193
    %v196 = vmul.u32.u64.compose %v192, %v187
    %v197 = vextract.low.u32 %v196
    %v198 = vextract.high.u32 %v196
    %v199 = vmul.u32 %v192, %v183
    %v200 = vadd.s32 %v195, %v197
    %vm201 = vc.u32 %v195, %v197
    %v202 = vadd.s32 %v198, 1
    %v203 = vsel %vm201, %v202, %v198
    %v204 = vadd.s32 %v199, %v203
    %v205 = vadd.s32 %v204, 536870912
    %v206 = vshrl.u32 %v205, 30
    %v207 = vshll.u32 %v206, 30
    %v208 = vsub.s32 %v204, %v207
    %vm209 = vcmp.lt.s32.totalorder %v208, 0
    %v210 = vsub.s32 0, %v208
    %v211 = vsel %vm209, %v210, %v208
    %v212 = vclz %v211
    %v213 = vsub.s32 %v212, 2
    %vm214 = vcmp.gt.s32.totalorder 0, %v213
    %v215 = vsel %vm214, 0, %v213
    %v216 = vsub.s32 32, %v215
    %v217 = vshll.u32 %v208, %v215
    %v218 = vshrl.u32 %v200, %v216
    %v219 = vor.u32 %v217, %v218
    %v220 = vsub.s32 4294967266, %v215
    %v221 = vadd.s32 %v220, 127
    %v222 = vshll.u32 %v221, 23
    %v223 = vor.u32 4788187, %v222
    %v224 = vand.u32 2147483647, %v223
    %v226 = vcvt.s32.f32 %v219
    %v227 = vmul.f32 %v226, %v224
    %v228 = vxor.u32 %v227, 2147483648
    %v229 = vsel %vm146, %v228, %v227
    %v230 = vsub.s32 4, %v206
    %v231 = vsel %vm146, %v230, %v206
    %v232 = vsel %vm145, %v40, %v229
    %v233 = vsel %vm145, 0, %v231
    %v234 = vcosq.f32.pop %v232
    %v235 = vsinq.f32.pop %v232
    %vm236 = vweird.f32 %v40
    %v237 = vadd.s32 %v233, 3
    %v238 = vand.u32 %v237, 3
    %vm239 = vcmp.lt.s32.totalorder %v238, 2
    %vm240 = vcmp.eq.s32.totalorder %v238, 0
    %v241 = vxor.u32 %v235, 2147483648
    %v242 = vsel %vm240, %v234, %v241
    %vm243 = vcmp.eq.s32.totalorder %v238, 2
    %v244 = vxor.u32 %v234, 2147483648
    %v245 = vsel %vm243, %v244, %v235
    %v246 = vsel %vm239, %v242, %v245
    %v247 = vsel %vm236, nan, %v246
    %249 = vrot.lane.b32.xlu0 %v143, 1
    %v250 = vpop.permute.xlu0 %249
    %v252 = vmul.f32 %v143, %v250
    %254 = vset.pattern.permute.xlu0 1
    %255 = vperm.xlu0 %254, %v252
    %v256 = vpop.permute.xlu0 %255
    %258 = vset.pattern.permute.xlu0 3
    %259 = vperm.xlu0 %258, %v252
    %v260 = vpop.permute.xlu0 %259
    %262 = vset.pattern.permute.xlu0 5
    %263 = vperm.xlu0 %262, %v252
    %v264 = vpop.permute.xlu0 %263
    %266 = vset.pattern.permute.xlu0 7
    %267 = vperm.xlu0 %266, %v252
    %v268 = vpop.permute.xlu0 %267
    %vm270 = vcmask 261120
    %v271 = vsel %vm270, %v256, %v260
    %vm272 = vcmask 523264
    %v273 = vsel %vm272, %v271, %v264
    %vm274 = vcmask 785408
    %v275 = vsel %vm274, %v273, %v268
    %277 = vrot.lane.b32.xlu0 %v247, 1
    %v278 = vpop.permute.xlu0 %277
    %v280 = vmul.f32 %v143, %v278
    %282 = vset.pattern.permute.xlu0 1
    %283 = vperm.xlu0 %282, %v280
    %v284 = vpop.permute.xlu0 %283
    %286 = vset.pattern.permute.xlu0 3
    %287 = vperm.xlu0 %286, %v280
    %v288 = vpop.permute.xlu0 %287
    %290 = vset.pattern.permute.xlu0 5
    %291 = vperm.xlu0 %290, %v280
    %v292 = vpop.permute.xlu0 %291
    %294 = vset.pattern.permute.xlu0 7
    %295 = vperm.xlu0 %294, %v280
    %v296 = vpop.permute.xlu0 %295
    %v298 = vsel %vm270, %v284, %v288
    %v299 = vsel %vm272, %v298, %v292
    %v300 = vsel %vm274, %v299, %v296
    %301 = vset.pattern.permute.xlu0 1
    %302 = vperm.xlu0 %301, %v247
    %v303 = vpop.permute.xlu0 %302
    %305 = vset.pattern.permute.xlu0 3
    %306 = vperm.xlu0 %305, %v247
    %v307 = vpop.permute.xlu0 %306
    %309 = vset.pattern.permute.xlu0 5
    %310 = vperm.xlu0 %309, %v247
    %v311 = vpop.permute.xlu0 %310
    %313 = vset.pattern.permute.xlu0 7
    %314 = vperm.xlu0 %313, %v247
    %v315 = vpop.permute.xlu0 %314
    %v317 = vsel %vm270, %v303, %v307
    %v318 = vsel %vm272, %v317, %v311
    %v319 = vsel %vm274, %v318, %v315
    %v320 = vld [vmem:[#allocation5] sm:$0x1]
    %v321 = vlaneseq
    %v322 = vshrl.u32 %v321, 7
    %v323 = vsub.s32 0, %v322
    %v324 = vrot.slane %v320, %v323
    %v325 = vmul.f32 %v275, %v324
    %v326 = vld [vmem:[#allocation5 + $0x1] sm:$0x1]
    %v327 = vlaneseq
    %v328 = vshrl.u32 %v327, 7
    %v329 = vsub.s32 0, %v328
    %v330 = vrot.slane %v326, %v329
    %v331 = vmul.f32 %v300, %v330
    %v332 = vadd.f32 %v325, %v331
    %v333 = vld [vmem:[#allocation5 + $0x2] sm:$0x1]
    %v334 = vlaneseq
    %v335 = vshrl.u32 %v334, 7
    %v336 = vsub.s32 0, %v335
    %v337 = vrot.slane %v333, %v336
    %v338 = vmul.f32 %v319, %v337
    %v339 = vadd.f32 %v332, %v338
    %v340 = vld [vmem:[%s2] sm:$0x1]
    %v342 = vlaneseq
    %v343 = vshrl.u32 %v342, 7
    %v344 = vsub.s32 0, %v343
    %v345 = vrot.slane %v340, %v344
    %v347 = vadd.f32 %v339, %v345
    %348 = vst [vmem:[#allocation7] sm:$0xff] %v347
    // Predicated region
    $region22: #{tpu_custom_call.1} parent=1 // pred_check
      _
    $region23: #{tpu_custom_call.1} parent=1 // pred_check_branch
      %350 = sbr.rel (0) target = $region25
    $region24: #{tpu_custom_call.1} parent=1 // pred_region
      %s352 = ssub.s32 128, 128
      %353 = vsyncadd [#allocation4], %s352
      %s355 = sshll.u32 [#allocation7], 4
      %s356 = int_to_ptr.vmem [resolvable:$true] %s355
      %358 = dma.vmem_to_hbm [thread:$0]  %s356, 128, %s3, [#allocation4]
    $region25: #{tpu_custom_call.1} parent=1 // pred_fallthru
      _
    // Predicated region
    $region26: #{tpu_custom_call.1} parent=1 // pred_check
      _
    $region27: #{tpu_custom_call.1} parent=1 // pred_check_branch
      %360 = sbr.rel (0) target = $region29
    $region28: #{tpu_custom_call.1} parent=1 // pred_region
      %361 = dma.done [#allocation4], 128
    $region29: #{tpu_custom_call.1} parent=1 // pred_fallthru
      _
    %362 = vsyncpa [#allocation3], 1
    %363 = vsyncpa [#allocation6], 1
    %364 = vsyncpa [#allocation4], 1

</llo_original>
